<compile_context>
chip_gen: v6e
topology: v6e:2x2x1
jax: 0.10.0
libtpu: 0.0.40
codegen_flags: <defaults>
</compile_context>

<pallas_src>
import functools

import jax
import jax.numpy as jnp
from jax.experimental import pallas as pl
from jax.experimental.pallas import tpu as pltpu


_LANE = 128
_SUBLANE = 8


def _round_up(x, m):
    return ((x + m - 1) // m) * m


# -----------------------------------------------------------------------------
# Pass 1: batch-global BatchNorm stats + attention softmax (prologue kernel)
# -----------------------------------------------------------------------------
def _bn_att_kernel(
    feats_ref,   # [C, Bp, D]  clip-major, batch padded (pad rows are zero)
    emg_ref,     # [Bp, C, E]
    mask_ref,    # [Bp, 1]     1.0 for valid batch rows, 0.0 for pad rows
    gamma_ref,   # [1, D]
    beta_ref,    # [1, D]
    w_att_ref,   # [1, E]
    b_att_ref,   # [1, 1]
    scale_ref,   # out [1, D]   gamma * rsqrt(var + eps)
    shift_ref,   # out [1, D]   beta - mean * scale
    att_ref,     # out [Bp, C]  softmax attention over clips
    *,
    n_valid_rows: int,
    eps: float,
):
    feats = feats_ref[...]                                   # [C, Bp, D]
    C, Bp, D = feats.shape
    inv_n = 1.0 / float(n_valid_rows)

    # ---- BatchNorm1d over the (B * n_clips, D) rows: two-pass variance ------
    x2 = feats.reshape(C * Bp, D)                            # pad rows are zero
    mean = jnp.sum(x2, axis=0, keepdims=True) * inv_n        # [1, D]
    diff = feats - mean                                      # [C, Bp, D]
    sq = diff * diff * mask_ref[...]                         # mask out pad rows
    var = jnp.sum(sq.reshape(C * Bp, D), axis=0, keepdims=True) * inv_n
    var = jnp.maximum(var, 0.0)                              # robustness clamp
    scale = gamma_ref[...] * jax.lax.rsqrt(var + eps)        # [1, D]
    scale_ref[...] = scale
    shift_ref[...] = beta_ref[...] - mean * scale

    # ---- AttentionScore: per-clip linear score -> softmax over clips --------
    scores = (
        jnp.sum(emg_ref[...] * w_att_ref[...][None, :, :], axis=-1)
        + b_att_ref[...]                                     # [Bp, C]
    )
    scores = scores - jnp.max(scores, axis=-1, keepdims=True)
    exp_s = jnp.exp(scores)
    # exact reciprocal: keeps sum(att) == 1 to f32 precision
    att_ref[...] = exp_s / jnp.sum(exp_s, axis=-1, keepdims=True)


# -----------------------------------------------------------------------------
# Pass 2: batch-tiled BN-apply + LSTM recurrence + classifier (main kernel)
# -----------------------------------------------------------------------------
def _lstm_cls_kernel(
    feats_ref,   # [C, TB, D]   batch tile of clip-major features (f32)
    att_ref,     # [TB, C]      attention weights for this tile (f32)
    scale_ref,   # [1, D]       folded BN scale (f32)
    shift_ref,   # [1, D]       folded BN shift (f32)
    w_ih_ref,    # [D, 4*Hp]    LSTM input->gates, gates ordered [i,f,o,g] (bf16)
    b_g_ref,     # [1, 4*Hp]    b_ih + b_hh, same gate order (f32)
    w_hh_ref,    # [Hp, 4*Hp]   LSTM hidden->gates (bf16)
    w_cls_ref,   # [Hp, NCp]    classifier weight (bf16)
    b_cls_ref,   # [1, NCp]     classifier bias (f32)
    out_ref,     # [TB, NCp]
    *,
    n_clips: int,
    hidden_pad: int,
):
    C = n_clips
    Hp = hidden_pad
    feats = feats_ref[...]                                   # [C, TB, D]
    _, TB, D = feats.shape
    att = att_ref[...]                                       # [TB, C]

    # ---- Apply folded BatchNorm (one FMA per element) ------------------------
    xn = feats.reshape(C * TB, D) * scale_ref[...] + shift_ref[...]

    # ---- Input projection hoisted out of the recurrence (bf16 MXU, f32 acc) --
    gates_x = (
        jnp.dot(xn.astype(jnp.bfloat16), w_ih_ref[...],
                preferred_element_type=jnp.float32)
        + b_g_ref[...]
    )                                                        # [C*TB, 4*Hp] f32

    # ---- LSTM recurrence: only h @ W_hh stays on the serial path -------------
    w_hh = w_hh_ref[...]                                     # bf16
    h = jnp.zeros((TB, Hp), jnp.float32)
    c = jnp.zeros((TB, Hp), jnp.float32)
    acc_h = jnp.zeros((TB, Hp), jnp.float32)

    # TODO(synk): for large n_clips switch to lax.fori_loop over a
    # [C, TB, 4*Hp]-reshaped gates_x to bound vreg live ranges.
    for clip in range(C):                                    # small static unroll
        gx = gates_x[clip * TB:(clip + 1) * TB, :]           # sublane-aligned
        gates = gx + jnp.dot(h.astype(jnp.bfloat16), w_hh,
                             preferred_element_type=jnp.float32)
        # gates ordered [i, f, o, g]: one wide sigmoid + one tanh per clip
        sig = jax.nn.sigmoid(gates[:, 0:3 * Hp])             # [TB, 3*Hp]
        g_g = jnp.tanh(gates[:, 3 * Hp:4 * Hp])              # [TB, Hp]
        i_g = sig[:, 0 * Hp:1 * Hp]
        f_g = sig[:, 1 * Hp:2 * Hp]
        o_g = sig[:, 2 * Hp:3 * Hp]
        c = f_g * c + i_g * g_g
        h = o_g * jnp.tanh(c)
        acc_h = acc_h + att[:, clip:clip + 1] * h            # attention-weighted h

    # ---- Single classifier matmul + mean over clips ---------------------------
    # sum_c att[b,c]*(h_c @ W + b) == (sum_c att[b,c] h_c) @ W + (sum_c att[b,c]) b
    att_sum = jnp.sum(att, axis=-1, keepdims=True)           # [TB, 1] (== 1 for softmax)
    logits = (
        jnp.dot(acc_h.astype(jnp.bfloat16), w_cls_ref[...],
                preferred_element_type=jnp.float32)
        + att_sum * b_cls_ref[...]
    )                                                        # [TB, NCp]
    out_ref[...] = logits * (1.0 / float(C))                 # torch.mean over clips


# -----------------------------------------------------------------------------
# Wrapper: pads / lays out data + weights, runs the two pallas_calls
# -----------------------------------------------------------------------------
def score_classifier_lstm(features, emg, params, *, n_clips, hidden_size,
                          n_classes, eps=1e-5, batch_tile=8):
    B, C, D = features.shape
    assert C == n_clips
    H = hidden_size

    Hp = _round_up(H, _LANE)              # each gate -> whole 128-lane vregs
    NCp = _round_up(n_classes, _LANE)     # lane-dense output store
    TB = max(_SUBLANE, _round_up(batch_tile, _SUBLANE))
    Bp = _round_up(B, TB)                 # batch padded to a whole tile count
    n_tiles = Bp // TB

    def pad_reorder_gates(w):
        # torch gate order is [i, f, g, o]; reorder to [i, f, o, g] so the three
        # sigmoid gates are contiguous, and zero-pad each gate to Hp columns so
        # padded hidden units stay inert (sigmoid(0)=0.5, tanh(0)=0 keep h_pad==0).
        i_g, f_g, g_g, o_g = jnp.split(w, 4, axis=-1)
        pad = [(0, 0)] * (w.ndim - 1) + [(0, Hp - H)]
        return jnp.concatenate(
            [jnp.pad(p, pad) for p in (i_g, f_g, o_g, g_g)], axis=-1)

    w_ih_p = pad_reorder_gates(params["w_ih"]).astype(jnp.bfloat16)        # [D, 4Hp]
    w_hh_p = pad_reorder_gates(
        jnp.pad(params["w_hh"], ((0, Hp - H), (0, 0)))).astype(jnp.bfloat16)  # [Hp, 4Hp]
    b_g_p = pad_reorder_gates(params["b_ih"] + params["b_hh"])             # [1, 4Hp] f32
    w_cls_p = jnp.pad(params["w_cls"],
                      ((0, Hp - H), (0, NCp - n_classes))).astype(jnp.bfloat16)  # [Hp, NCp]
    b_cls_p = jnp.pad(params["b_cls"], ((0, 0), (0, NCp - n_classes)))     # [1, NCp]

    feats_t = jnp.pad(jnp.transpose(features, (1, 0, 2)),
                      ((0, 0), (0, Bp - B), (0, 0)))                       # [C, Bp, D]
    emg_p = jnp.pad(emg, ((0, Bp - B), (0, 0), (0, 0)))                    # [Bp, C, E]
    row_mask = (jnp.arange(Bp) < B).astype(jnp.float32).reshape(Bp, 1)     # [Bp, 1]

    # ---- Pass 1: batch-global BN stats + attention softmax -------------------
    pro_args = (feats_t, emg_p, row_mask, params["gamma"], params["beta"],
                params["w_att"], params["b_att"])
    pro_in_specs = [
        pl.BlockSpec(a.shape, lambda *_, nd=a.ndim: (0,) * nd) for a in pro_args
    ]
    scale, shift, att = pl.pallas_call(
        functools.partial(_bn_att_kernel, n_valid_rows=B * C, eps=eps),
        grid=(1,),
        in_specs=pro_in_specs,
        out_specs=(
            pl.BlockSpec((1, D), lambda i: (0, 0)),
            pl.BlockSpec((1, D), lambda i: (0, 0)),
            pl.BlockSpec((Bp, C), lambda i: (0, 0)),
        ),
        out_shape=(
            jax.ShapeDtypeStruct((1, D), jnp.float32),
            jax.ShapeDtypeStruct((1, D), jnp.float32),
            jax.ShapeDtypeStruct((Bp, C), jnp.float32),
        ),
        compiler_params=pltpu.CompilerParams(
            dimension_semantics=("arbitrary",)),
    )(*pro_args)

    # ---- Pass 2: batch-tiled LSTM + classifier --------------------------------
    # "parallel" batch axis: shards across v7x's 2 TensorCores and pipelines the
    # feats tiles HBM->VMEM.  At production shapes, size TB against v7x's 64 MiB
    # VMEM (gates_x ~ TB*C*4Hp*4B is the dominant per-tile consumer) and raise
    # vmem_limit_bytes via CompilerParams if needed; at these shapes defaults fit.
    main_args = (feats_t, att, scale, shift,
                 w_ih_p, b_g_p, w_hh_p, w_cls_p, b_cls_p)
    main_in_specs = [
        pl.BlockSpec((C, TB, D), lambda b: (0, b, 0)),        # feats: batch-tiled
        pl.BlockSpec((TB, C), lambda b: (b, 0)),              # att:   batch-tiled
        pl.BlockSpec((1, D), lambda b: (0, 0)),               # scale
        pl.BlockSpec((1, D), lambda b: (0, 0)),               # shift
        pl.BlockSpec((D, 4 * Hp), lambda b: (0, 0)),          # w_ih
        pl.BlockSpec((1, 4 * Hp), lambda b: (0, 0)),          # b_gates
        pl.BlockSpec((Hp, 4 * Hp), lambda b: (0, 0)),         # w_hh
        pl.BlockSpec((Hp, NCp), lambda b: (0, 0)),            # w_cls
        pl.BlockSpec((1, NCp), lambda b: (0, 0)),             # b_cls
    ]
    out = pl.pallas_call(
        functools.partial(_lstm_cls_kernel, n_clips=C, hidden_pad=Hp),
        grid=(n_tiles,),
        in_specs=main_in_specs,
        out_specs=pl.BlockSpec((TB, NCp), lambda b: (b, 0)),
        out_shape=jax.ShapeDtypeStruct((Bp, NCp), jnp.float32),
        compiler_params=pltpu.CompilerParams(
            dimension_semantics=("parallel",)),
    )(*main_args)

    return out[:B, :n_classes]


# -----------------------------------------------------------------------------
# Pure-JAX reference (same math, unpadded, f32) for a correctness check
# -----------------------------------------------------------------------------
def _reference(features, emg, p, *, n_clips, hidden_size, n_classes, eps=1e-5):
    B, C, D = features.shape
    H = hidden_size
    scores = jnp.sum(emg * p["w_att"][None, :, :], axis=-1) + p["b_att"][0, 0]
    att = jax.nn.softmax(scores, axis=-1)

    x2d = features.reshape(B * C, D)
    mean = jnp.mean(x2d, axis=0, keepdims=True)
    var = jnp.mean((x2d - mean) ** 2, axis=0, keepdims=True)
    xn = ((x2d - mean) / jnp.sqrt(var + eps)) * p["gamma"] + p["beta"]
    xn = xn.reshape(B, C, D)

    h = jnp.zeros((B, H), jnp.float32)
    c = jnp.zeros((B, H), jnp.float32)
    acc = jnp.zeros((B, n_classes), jnp.float32)
    for clip in range(n_clips):
        x_t = xn[:, clip, :]
        g = x_t @ p["w_ih"] + h @ p["w_hh"] + p["b_ih"] + p["b_hh"]
        i_g = jax.nn.sigmoid(g[:, 0:H])
        f_g = jax.nn.sigmoid(g[:, H:2 * H])
        g_g = jnp.tanh(g[:, 2 * H:3 * H])
        o_g = jax.nn.sigmoid(g[:, 3 * H:4 * H])
        c = f_g * c + i_g * g_g
        h = o_g * jnp.tanh(c)
        acc = acc + (h @ p["w_cls"] + p["b_cls"]) * att[:, clip:clip + 1]
    return acc / float(n_clips)


# -----------------------------------------------------------------------------
# Main
# -----------------------------------------------------------------------------
if __name__ == "__main__":
    # Small, self-consistent shapes (scaled-down version of the module).
    # B=16 with batch_tile=8 gives a 2-step "parallel" batch grid.
    B = 16           # batch_size
    C = 5            # n_clips
    D = 128          # input_size
    H = 64           # hidden_size
    NC = 8           # n_classes
    E = 16           # emg feature dim (input to AttentionScore)

    key = jax.random.PRNGKey(0)
    keys = jax.random.split(key, 10)

    features = jax.random.normal(keys[0], (B, C, D), jnp.float32)   # data[f1]
    emg = jax.random.normal(keys[1], (B, C, E), jnp.float32)        # data[f2]

    def unif(k, shape, bound):
        return jax.random.uniform(k, shape, jnp.float32, -bound, bound)

    k_lstm = 1.0 / jnp.sqrt(H).astype(jnp.float32)
    k_cls = 1.0 / jnp.sqrt(H).astype(jnp.float32)
    k_att = 1.0 / jnp.sqrt(E).astype(jnp.float32)

    params = {
        # BatchNorm1d(input_size)
        "gamma": jnp.ones((1, D), jnp.float32),
        "beta": jnp.zeros((1, D), jnp.float32),
        # AttentionScore: Linear(E -> 1)
        "w_att": unif(keys[2], (1, E), k_att),
        "b_att": unif(keys[3], (1, 1), k_att),
        # LSTM(input_size=D, hidden_size=H), weights pre-transposed to [in, 4H]
        "w_ih": unif(keys[4], (D, 4 * H), k_lstm),
        "b_ih": unif(keys[5], (1, 4 * H), k_lstm),
        "w_hh": unif(keys[6], (H, 4 * H), k_lstm),
        "b_hh": unif(keys[7], (1, 4 * H), k_lstm),
        # classifier: Linear(H -> n_classes), pre-transposed to [H, NC]
        "w_cls": unif(keys[8], (H, NC), k_cls),
        "b_cls": unif(keys[9], (1, NC), k_cls),
    }

    out = score_classifier_lstm(
        features, emg, params,
        n_clips=C, hidden_size=H, n_classes=NC, batch_tile=8,
    )
    out = jax.block_until_ready(out)

    ref = _reference(
        features, emg, params,
        n_clips=C, hidden_size=H, n_classes=NC,
    )
    ref = jax.block_until_ready(ref)

    assert out.shape == (B, NC), out.shape
    # bf16 MXU operands (f32 accumulation) vs the f32 reference -> slightly
    # looser tolerance than a pure-f32 comparison.
    assert jnp.allclose(out, ref, atol=2e-2, rtol=2e-2), (
        f"max abs err = {jnp.max(jnp.abs(out - ref))}"
    )

    print("KERNEL_OK")
</pallas_src>

<mosaic_0001>
module attributes {stable_mosaic.version = 11 : i64} {
  func.func @_bn_att_kernel(%arg0: i32, %arg1: memref<5x16x128xf32, #tpu.memory_space<vmem>>, %arg2: memref<16x5x16xf32, #tpu.memory_space<vmem>>, %arg3: memref<16x1xf32, #tpu.memory_space<vmem>>, %arg4: memref<1x128xf32, #tpu.memory_space<vmem>>, %arg5: memref<1x128xf32, #tpu.memory_space<vmem>>, %arg6: memref<1x16xf32, #tpu.memory_space<vmem>>, %arg7: memref<1x1xf32, #tpu.memory_space<vmem>>, %arg8: memref<1x128xf32, #tpu.memory_space<vmem>>, %arg9: memref<1x128xf32, #tpu.memory_space<vmem>>, %arg10: memref<16x5xf32, #tpu.memory_space<vmem>>) attributes {dimension_semantics = [#tpu.dimension_semantics<arbitrary>], iteration_bounds = array<i64: 1>, scalar_prefetch = 0 : i64, scratch_operands = 0 : i64, tpu.core_type = #tpu.core_type<tc>, window_params = [{pipeline_mode = #tpu.pipeline_mode<synchronous>, transform_indices = @transform_0, window_bounds = array<i64: 5, 16, 128>}, {pipeline_mode = #tpu.pipeline_mode<synchronous>, transform_indices = @transform_1, window_bounds = array<i64: 16, 5, 16>}, {pipeline_mode = #tpu.pipeline_mode<synchronous>, transform_indices = @transform_2, window_bounds = array<i64: 16, 1>}, {pipeline_mode = #tpu.pipeline_mode<synchronous>, transform_indices = @transform_3, window_bounds = array<i64: 1, 128>}, {pipeline_mode = #tpu.pipeline_mode<synchronous>, transform_indices = @transform_4, window_bounds = array<i64: 1, 128>}, {pipeline_mode = #tpu.pipeline_mode<synchronous>, transform_indices = @transform_5, window_bounds = array<i64: 1, 16>}, {pipeline_mode = #tpu.pipeline_mode<synchronous>, transform_indices = @transform_6, window_bounds = array<i64: 1, 1>}, {pipeline_mode = #tpu.pipeline_mode<synchronous>, transform_indices = @transform_7, window_bounds = array<i64: 1, 128>}, {pipeline_mode = #tpu.pipeline_mode<synchronous>, transform_indices = @transform_8, window_bounds = array<i64: 1, 128>}, {pipeline_mode = #tpu.pipeline_mode<synchronous>, transform_indices = @transform_9, window_bounds = array<i64: 16, 5>}]} {
    %c0 = arith.constant 0 : index
    %c0_0 = arith.constant 0 : index
    %c0_1 = arith.constant 0 : index
    %0 = vector.load %arg1[%c0, %c0_0, %c0_1] : memref<5x16x128xf32, #tpu.memory_space<vmem>>, vector<5x16x128xf32>
    %1 = vector.shape_cast %0 : vector<5x16x128xf32> to vector<80x128xf32>
    %cst = arith.constant dense<0.000000e+00> : vector<128xf32>
    %2 = vector.multi_reduction <add>, %1, %cst [0] : vector<80x128xf32> to vector<128xf32>
    %3 = vector.shape_cast %2 : vector<128xf32> to vector<1x128xf32>
    %cst_2 = arith.constant 1.250000e-02 : f32
    %4 = vector.broadcast %cst_2 : f32 to vector<1x128xf32>
    %5 = arith.mulf %3, %4 : vector<1x128xf32>
    %6 = vector.shape_cast %5 : vector<1x128xf32> to vector<1x1x128xf32>
    %7 = vector.broadcast %6 : vector<1x1x128xf32> to vector<5x16x128xf32>
    %8 = arith.subf %0, %7 : vector<5x16x128xf32>
    %9 = arith.mulf %8, %8 : vector<5x16x128xf32>
    %c0_3 = arith.constant 0 : index
    %c0_4 = arith.constant 0 : index
    %10 = vector.load %arg3[%c0_3, %c0_4] : memref<16x1xf32, #tpu.memory_space<vmem>>, vector<16x1xf32>
    %11 = vector.shape_cast %10 : vector<16x1xf32> to vector<1x16x1xf32>
    %12 = vector.broadcast %11 : vector<1x16x1xf32> to vector<5x16x128xf32>
    %13 = arith.mulf %9, %12 : vector<5x16x128xf32>
    %14 = vector.shape_cast %13 : vector<5x16x128xf32> to vector<80x128xf32>
    %cst_5 = arith.constant dense<0.000000e+00> : vector<128xf32>
    %15 = vector.multi_reduction <add>, %14, %cst_5 [0] : vector<80x128xf32> to vector<128xf32>
    %16 = vector.shape_cast %15 : vector<128xf32> to vector<1x128xf32>
    %cst_6 = arith.constant 1.250000e-02 : f32
    %17 = vector.broadcast %cst_6 : f32 to vector<1x128xf32>
    %18 = arith.mulf %16, %17 : vector<1x128xf32>
    %cst_7 = arith.constant 0.000000e+00 : f32
    %19 = vector.broadcast %cst_7 : f32 to vector<1x128xf32>
    %20 = arith.maximumf %18, %19 : vector<1x128xf32>
    %c0_8 = arith.constant 0 : index
    %c0_9 = arith.constant 0 : index
    %21 = vector.load %arg4[%c0_8, %c0_9] : memref<1x128xf32, #tpu.memory_space<vmem>>, vector<1x128xf32>
    %cst_10 = arith.constant 9.99999974E-6 : f32
    %22 = vector.broadcast %cst_10 : f32 to vector<1x128xf32>
    %23 = arith.addf %20, %22 : vector<1x128xf32>
    %24 = math.rsqrt %23 : vector<1x128xf32>
    %25 = arith.mulf %21, %24 : vector<1x128xf32>
    %c0_11 = arith.constant 0 : index
    %c0_12 = arith.constant 0 : index
    %26 = vector.load %arg8[%c0_11, %c0_12] : memref<1x128xf32, #tpu.memory_space<vmem>>, vector<1x128xf32>
    tpu.vector_store %arg8[%c0_11, %c0_12], %25 {strides = array<i32>} : memref<1x128xf32, #tpu.memory_space<vmem>>, vector<1x128xf32>,
    %c0_13 = arith.constant 0 : index
    %c0_14 = arith.constant 0 : index
    %27 = vector.load %arg5[%c0_13, %c0_14] : memref<1x128xf32, #tpu.memory_space<vmem>>, vector<1x128xf32>
    %28 = arith.mulf %5, %25 : vector<1x128xf32>
    %29 = arith.subf %27, %28 : vector<1x128xf32>
    %c0_15 = arith.constant 0 : index
    %c0_16 = arith.constant 0 : index
    %30 = vector.load %arg9[%c0_15, %c0_16] : memref<1x128xf32, #tpu.memory_space<vmem>>, vector<1x128xf32>
    tpu.vector_store %arg9[%c0_15, %c0_16], %29 {strides = array<i32>} : memref<1x128xf32, #tpu.memory_space<vmem>>, vector<1x128xf32>,
    %c0_17 = arith.constant 0 : index
    %c0_18 = arith.constant 0 : index
    %c0_19 = arith.constant 0 : index
    %31 = vector.load %arg2[%c0_17, %c0_18, %c0_19] : memref<16x5x16xf32, #tpu.memory_space<vmem>>, vector<16x5x16xf32>
    %c0_20 = arith.constant 0 : index
    %c0_21 = arith.constant 0 : index
    %32 = vector.load %arg6[%c0_20, %c0_21] : memref<1x16xf32, #tpu.memory_space<vmem>>, vector<1x16xf32>
    %33 = vector.shape_cast %32 : vector<1x16xf32> to vector<1x1x16xf32>
    %34 = vector.broadcast %33 : vector<1x1x16xf32> to vector<16x5x16xf32>
    %35 = arith.mulf %31, %34 : vector<16x5x16xf32>
    %cst_22 = arith.constant dense<0.000000e+00> : vector<16x5xf32>
    %36 = vector.multi_reduction <add>, %35, %cst_22 [2] : vector<16x5x16xf32> to vector<16x5xf32>
    %c0_23 = arith.constant 0 : index
    %c0_24 = arith.constant 0 : index
    %37 = vector.load %arg7[%c0_23, %c0_24] : memref<1x1xf32, #tpu.memory_space<vmem>>, vector<1x1xf32>
    %38 = vector.broadcast %37 : vector<1x1xf32> to vector<16x5xf32>
    %39 = arith.addf %36, %38 : vector<16x5xf32>
    %cst_25 = arith.constant dense<0xFF800000> : vector<16xf32>
    %40 = vector.multi_reduction <maximumf>, %39, %cst_25 [1] : vector<16x5xf32> to vector<16xf32>
    %41 = vector.shape_cast %40 : vector<16xf32> to vector<16x1xf32>
    %42 = vector.broadcast %41 : vector<16x1xf32> to vector<16x5xf32>
    %43 = arith.subf %39, %42 : vector<16x5xf32>
    %44 = math.exp %43 : vector<16x5xf32>
    %cst_26 = arith.constant dense<0.000000e+00> : vector<16xf32>
    %45 = vector.multi_reduction <add>, %44, %cst_26 [1] : vector<16x5xf32> to vector<16xf32>
    %46 = vector.shape_cast %45 : vector<16xf32> to vector<16x1xf32>
    %47 = vector.broadcast %46 : vector<16x1xf32> to vector<16x5xf32>
    %48 = arith.divf %44, %47 : vector<16x5xf32>
    %c0_27 = arith.constant 0 : index
    %c0_28 = arith.constant 0 : index
    %49 = vector.load %arg10[%c0_27, %c0_28] : memref<16x5xf32, #tpu.memory_space<vmem>>, vector<16x5xf32>
    tpu.vector_store %arg10[%c0_27, %c0_28], %48 {strides = array<i32>} : memref<16x5xf32, #tpu.memory_space<vmem>>, vector<16x5xf32>,
    return
  }
  func.func @transform_0(%arg0: i32) -> (i32, i32, i32) {
    %c0_i32 = arith.constant 0 : i32
    %c0_i32_0 = arith.constant 0 : i32
    %c0_i32_1 = arith.constant 0 : i32
    %c0_i32_2 = arith.constant 0 : i32
    return %c0_i32, %c0_i32_0, %c0_i32_1 : i32, i32, i32
  }
  func.func @transform_1(%arg0: i32) -> (i32, i32, i32) {
    %c0_i32 = arith.constant 0 : i32
    %c0_i32_0 = arith.constant 0 : i32
    %c0_i32_1 = arith.constant 0 : i32
    %c0_i32_2 = arith.constant 0 : i32
    return %c0_i32, %c0_i32_0, %c0_i32_1 : i32, i32, i32
  }
  func.func @transform_2(%arg0: i32) -> (i32, i32) {
    %c0_i32 = arith.constant 0 : i32
    %c0_i32_0 = arith.constant 0 : i32
    %c0_i32_1 = arith.constant 0 : i32
    return %c0_i32, %c0_i32_0 : i32, i32
  }
  func.func @transform_3(%arg0: i32) -> (i32, i32) {
    %c0_i32 = arith.constant 0 : i32
    %c0_i32_0 = arith.constant 0 : i32
    %c0_i32_1 = arith.constant 0 : i32
    return %c0_i32, %c0_i32_0 : i32, i32
  }
  func.func @transform_4(%arg0: i32) -> (i32, i32) {
    %c0_i32 = arith.constant 0 : i32
    %c0_i32_0 = arith.constant 0 : i32
    %c0_i32_1 = arith.constant 0 : i32
    return %c0_i32, %c0_i32_0 : i32, i32
  }
  func.func @transform_5(%arg0: i32) -> (i32, i32) {
    %c0_i32 = arith.constant 0 : i32
    %c0_i32_0 = arith.constant 0 : i32
    %c0_i32_1 = arith.constant 0 : i32
    return %c0_i32, %c0_i32_0 : i32, i32
  }
  func.func @transform_6(%arg0: i32) -> (i32, i32) {
    %c0_i32 = arith.constant 0 : i32
    %c0_i32_0 = arith.constant 0 : i32
    %c0_i32_1 = arith.constant 0 : i32
    return %c0_i32, %c0_i32_0 : i32, i32
  }
  func.func @transform_7(%arg0: i32) -> (i32, i32) {
    %c0_i32 = arith.constant 0 : i32
    %c0_i32_0 = arith.constant 0 : i32
    %c0_i32_1 = arith.constant 0 : i32
    return %c0_i32, %c0_i32_0 : i32, i32
  }
  func.func @transform_8(%arg0: i32) -> (i32, i32) {
    %c0_i32 = arith.constant 0 : i32
    %c0_i32_0 = arith.constant 0 : i32
    %c0_i32_1 = arith.constant 0 : i32
    return %c0_i32, %c0_i32_0 : i32, i32
  }
  func.func @transform_9(%arg0: i32) -> (i32, i32) {
    %c0_i32 = arith.constant 0 : i32
    %c0_i32_0 = arith.constant 0 : i32
    %c0_i32_1 = arith.constant 0 : i32
    return %c0_i32, %c0_i32_0 : i32, i32
  }
}

</mosaic_0001>

<llo_original>
// kernel: tpu_custom_call.1
$region0: #{tpu_custom_call.1}
  #allocation0 [shape = 'u32[]', space=smem, size = 0x4, offset = 0x4, fixed_abs, tag = 'smem constant byte address 0x4 - core index']
  #allocation1 [shape = 'u32[144,128]{1,0:T(1,128)}', space=vmem, size = 0x12000, scoped, tag = 'internal scratch']
  #allocation2 [shape = 'f32[1,1]{1,0:T(1,128)S(1)}', space=vmem, size = 0x200, scoped, tag = 'scoped memory for tpu_custom_call.1']
  %s0 = inlined_call_operand.vmem [shape: f32[5,16,128], index: 0, kind: input, shape index: {}]
  %s1 = inlined_call_operand.vmem [shape: f32[16,5,16], index: 1, kind: input, shape index: {}]
  %s2 = inlined_call_operand.vmem [shape: f32[16,1], index: 2, kind: input, shape index: {}]
  %s3 = inlined_call_operand.vmem [shape: f32[1,128], index: 3, kind: input, shape index: {}]
  %s4 = inlined_call_operand.vmem [shape: f32[1,128], index: 4, kind: input, shape index: {}]
  %s5 = inlined_call_operand.vmem [shape: f32[1,16], index: 5, kind: input, shape index: {}]
  %s6 = inlined_call_operand.<no memory space> [shape: f32[1,1], index: 6, kind: input, shape index: {}]
  %s7 = inlined_call_operand.hbm [shape: f32[1,128], index: 7, kind: output, shape index: {0}]
  %s8 = inlined_call_operand.hbm [shape: f32[1,128], index: 8, kind: output, shape index: {1}]
  %s9 = inlined_call_operand.vmem [shape: f32[16,5], index: 9, kind: output, shape index: {2}]
  %10 = xla_tuple %s7, %s8, %s9
  %s11 = sld [smem:[#allocation0]]
  $region54: #{tpu_custom_call.1} parent=0
    _
  %s13 = ssub.s32 1, %s11
  %s14 = scalar_select 0, %s13, %s11
  %v15 = vstv %s6
  %16 = vst [vmem:[#allocation2] sm:$0x1] %v15
  $region1: #{tpu_custom_call.1} parent=0
    #allocation3 [shape = 'u8[512]{0}', space=vmem, size = 0x400, scoped, tag = 'output window, operand 0, single buffered']
    #allocation4 [shape = 's32[1]{0}', space=sflag, size = 0x4, scoped, tag = 'scoped memory for tpu_custom_call.1']
    #allocation5 [shape = 'u8[512]{0}', space=vmem, size = 0x400, scoped, tag = 'output window, operand 1, single buffered']
    #allocation6 [shape = 's32[1]{0}', space=sflag, size = 0x4, scoped, tag = 'scoped memory for tpu_custom_call.1']
    %17 = vsyncpa [#allocation4], 0
    %18 = vsyncpa [#allocation6], 0
    // Predicated region
    $region2: #{tpu_custom_call.1} parent=1 // pred_check
      _
    $region3: #{tpu_custom_call.1} parent=1 // pred_check_branch
      %20 = sbr.rel (0) target = $region5
    $region4: #{tpu_custom_call.1} parent=1 // pred_region
      _
    $region5: #{tpu_custom_call.1} parent=1 // pred_fallthru
      _
    // Predicated region
    $region6: #{tpu_custom_call.1} parent=1 // pred_check
      _
    $region7: #{tpu_custom_call.1} parent=1 // pred_check_branch
      %22 = sbr.rel (0) target = $region9
    $region8: #{tpu_custom_call.1} parent=1 // pred_region
      _
    $region9: #{tpu_custom_call.1} parent=1 // pred_fallthru
      _
    // Predicated region
    $region10: #{tpu_custom_call.1} parent=1 // pred_check
      _
    $region11: #{tpu_custom_call.1} parent=1 // pred_check_branch
      %24 = sbr.rel (0) target = $region13
    $region12: #{tpu_custom_call.1} parent=1 // pred_region
      _
    $region13: #{tpu_custom_call.1} parent=1 // pred_fallthru
      _
    // Predicated region
    $region14: #{tpu_custom_call.1} parent=1 // pred_check
      _
    $region15: #{tpu_custom_call.1} parent=1 // pred_check_branch
      %26 = sbr.rel (0) target = $region17
    $region16: #{tpu_custom_call.1} parent=1 // pred_region
      _
    $region17: #{tpu_custom_call.1} parent=1 // pred_fallthru
      _
    // Predicated region
    $region18: #{tpu_custom_call.1} parent=1 // pred_check
      _
    $region19: #{tpu_custom_call.1} parent=1 // pred_check_branch
      %28 = sbr.rel (0) target = $region21
    $region20: #{tpu_custom_call.1} parent=1 // pred_region
      _
    $region21: #{tpu_custom_call.1} parent=1 // pred_fallthru
      _
    // Predicated region
    $region22: #{tpu_custom_call.1} parent=1 // pred_check
      _
    $region23: #{tpu_custom_call.1} parent=1 // pred_check_branch
      %30 = sbr.rel (0) target = $region25
    $region24: #{tpu_custom_call.1} parent=1 // pred_region
      _
    $region25: #{tpu_custom_call.1} parent=1 // pred_fallthru
      _
    // Predicated region
    $region26: #{tpu_custom_call.1} parent=1 // pred_check
      _
    $region27: #{tpu_custom_call.1} parent=1 // pred_check_branch
      %32 = sbr.rel (0) target = $region29
    $region28: #{tpu_custom_call.1} parent=1 // pred_region
      _
    $region29: #{tpu_custom_call.1} parent=1 // pred_fallthru
      _
    %v33 = vld [vmem:[%s0] sm:$0xff]
    %v34 = vld [vmem:[%s0 + $0x8] sm:$0xff]
    %v35 = vld [vmem:[%s0 + $0x10] sm:$0xff]
    %v36 = vld [vmem:[%s0 + $0x18] sm:$0xff]
    %v37 = vld [vmem:[%s0 + $0x20] sm:$0xff]
    %v38 = vld [vmem:[%s0 + $0x28] sm:$0xff]
    %v39 = vld [vmem:[%s0 + $0x30] sm:$0xff]
    %v40 = vld [vmem:[%s0 + $0x38] sm:$0xff]
    %v41 = vld [vmem:[%s0 + $0x40] sm:$0xff]
    %v42 = vld [vmem:[%s0 + $0x48] sm:$0xff]
    %v43 = vadd.f32 %v33, %v34
    %v44 = vadd.f32 %v43, %v35
    %v45 = vadd.f32 %v44, %v36
    %v46 = vadd.f32 %v45, %v37
    %v47 = vadd.f32 %v46, %v38
    %v48 = vadd.f32 %v47, %v39
    %v49 = vadd.f32 %v48, %v40
    %v50 = vadd.f32 %v49, %v41
    %v51 = vadd.f32 %v50, %v42
    %v52 = vrot.slane %v51, 4
    %v53 = vadd.f32 %v51, %v52
    %v54 = vrot.slane %v53, 2
    %v55 = vadd.f32 %v53, %v54
    %v56 = vrot.slane %v55, 1
    %v57 = vadd.f32 %v55, %v56
    %v58 = vmul.f32 %v57, 0.0125
    %v59 = vsub.f32 %v33, %v58
    %v60 = vsub.f32 %v34, %v58
    %v61 = vsub.f32 %v35, %v58
    %v62 = vsub.f32 %v36, %v58
    %v63 = vsub.f32 %v37, %v58
    %v64 = vsub.f32 %v38, %v58
    %v65 = vsub.f32 %v39, %v58
    %v66 = vsub.f32 %v40, %v58
    %v67 = vsub.f32 %v41, %v58
    %v68 = vsub.f32 %v42, %v58
    %v69 = vmul.f32 %v59, %v59
    %v70 = vmul.f32 %v60, %v60
    %v71 = vmul.f32 %v61, %v61
    %v72 = vmul.f32 %v62, %v62
    %v73 = vmul.f32 %v63, %v63
    %v74 = vmul.f32 %v64, %v64
    %v75 = vmul.f32 %v65, %v65
    %v76 = vmul.f32 %v66, %v66
    %v77 = vmul.f32 %v67, %v67
    %v78 = vmul.f32 %v68, %v68
    %v79 = vld [vmem:[%s2] sm:$0xff]
    %v80 = vld [vmem:[%s2 + $0x8] sm:$0xff]
    %82 = vset.pattern.permute.xlu0 0
    %83 = vperm.xlu0 %82, %v79
    %v84 = vpop.permute.xlu0 %83
    %87 = vset.pattern.permute.xlu0 0
    %88 = vperm.xlu0 %87, %v80
    %v89 = vpop.permute.xlu0 %88
    %v91 = vmul.f32 %v69, %v84
    %v92 = vmul.f32 %v70, %v89
    %v93 = vmul.f32 %v71, %v84
    %v94 = vmul.f32 %v72, %v89
    %v95 = vmul.f32 %v73, %v84
    %v96 = vmul.f32 %v74, %v89
    %v97 = vmul.f32 %v75, %v84
    %v98 = vmul.f32 %v76, %v89
    %v99 = vmul.f32 %v77, %v84
    %v100 = vmul.f32 %v78, %v89
    %v101 = vadd.f32 %v91, %v92
    %v102 = vadd.f32 %v101, %v93
    %v103 = vadd.f32 %v102, %v94
    %v104 = vadd.f32 %v103, %v95
    %v105 = vadd.f32 %v104, %v96
    %v106 = vadd.f32 %v105, %v97
    %v107 = vadd.f32 %v106, %v98
    %v108 = vadd.f32 %v107, %v99
    %v109 = vadd.f32 %v108, %v100
    %v110 = vrot.slane %v109, 4
    %v111 = vadd.f32 %v109, %v110
    %v112 = vrot.slane %v111, 2
    %v113 = vadd.f32 %v111, %v112
    %v114 = vrot.slane %v113, 1
    %v115 = vadd.f32 %v113, %v114
    %v116 = vmul.f32 %v115, 0.0125
    %v117 = vmax.f32 %v116, 0.0
    %v118 = vld [vmem:[%s3] sm:$0x1]
    %v119 = vadd.f32 %v117, 1e-05
    %v120 = vrsqrt.pop %v119
    %v121 = vmul.f32 %v118, %v120
    %122 = vst [vmem:[#allocation3] sm:$0x1] %v121
    %v123 = vld [vmem:[%s4] sm:$0x1]
    %v124 = vmul.f32 %v58, %v121
    %v125 = vsub.f32 %v123, %v124
    %126 = vst [vmem:[#allocation5] sm:$0x1] %v125
    %v127 = vld [vmem:[%s1] sm:$0x1f]
    %v128 = vld [vmem:[%s1 + $0x8] sm:$0x1f]
    %v129 = vld [vmem:[%s1 + $0x10] sm:$0x1f]
    %v130 = vld [vmem:[%s1 + $0x18] sm:$0x1f]
    %v131 = vld [vmem:[%s1 + $0x20] sm:$0x1f]
    %v132 = vld [vmem:[%s1 + $0x28] sm:$0x1f]
    %v133 = vld [vmem:[%s1 + $0x30] sm:$0x1f]
    %v134 = vld [vmem:[%s1 + $0x38] sm:$0x1f]
    %v135 = vld [vmem:[%s1 + $0x40] sm:$0x1f]
    %v136 = vld [vmem:[%s1 + $0x48] sm:$0x1f]
    %v137 = vld [vmem:[%s1 + $0x50] sm:$0x1f]
    %v138 = vld [vmem:[%s1 + $0x58] sm:$0x1f]
    %v139 = vld [vmem:[%s1 + $0x60] sm:$0x1f]
    %v140 = vld [vmem:[%s1 + $0x68] sm:$0x1f]
    %v141 = vld [vmem:[%s1 + $0x70] sm:$0x1f]
    %v142 = vld [vmem:[%s1 + $0x78] sm:$0x1f]
    %v143 = vld [vmem:[%s5] sm:$0x1]
    %v145 = vlaneseq
    %v146 = vshrl.u32 %v145, 7
    %v147 = vsub.s32 0, %v146
    %v148 = vrot.slane %v143, %v147
    %v150 = vmul.f32 %v127, %v148
    %v151 = vmul.f32 %v128, %v148
    %v152 = vmul.f32 %v129, %v148
    %v153 = vmul.f32 %v130, %v148
    %v154 = vmul.f32 %v131, %v148
    %v155 = vmul.f32 %v132, %v148
    %v156 = vmul.f32 %v133, %v148
    %v157 = vmul.f32 %v134, %v148
    %v158 = vmul.f32 %v135, %v148
    %v159 = vmul.f32 %v136, %v148
    %v160 = vmul.f32 %v137, %v148
    %v161 = vmul.f32 %v138, %v148
    %v162 = vmul.f32 %v139, %v148
    %v163 = vmul.f32 %v140, %v148
    %v164 = vmul.f32 %v141, %v148
    %v165 = vmul.f32 %v142, %v148
    %vm166 = vcmask 126976
    %v167 = vsel %vm166, %v150, 0.0
    %168 = vadd.xlane.f32.xlu0 %v167
    %v169 = vpop.xlane.xlu0 %168
    %v170 = vsel %vm166, %v151, 0.0
    %171 = vadd.xlane.f32.xlu0 %v170
    %v172 = vpop.xlane.xlu0 %171
    %v173 = vsel %vm166, %v152, 0.0
    %174 = vadd.xlane.f32.xlu0 %v173
    %v175 = vpop.xlane.xlu0 %174
    %v176 = vsel %vm166, %v153, 0.0
    %177 = vadd.xlane.f32.xlu0 %v176
    %v178 = vpop.xlane.xlu0 %177
    %v179 = vsel %vm166, %v154, 0.0
    %180 = vadd.xlane.f32.xlu0 %v179
    %v181 = vpop.xlane.xlu0 %180
    %v182 = vsel %vm166, %v155, 0.0
    %183 = vadd.xlane.f32.xlu0 %v182
    %v184 = vpop.xlane.xlu0 %183
    %v185 = vsel %vm166, %v156, 0.0
    %186 = vadd.xlane.f32.xlu0 %v185
    %v187 = vpop.xlane.xlu0 %186
    %v188 = vsel %vm166, %v157, 0.0
    %189 = vadd.xlane.f32.xlu0 %v188
    %v190 = vpop.xlane.xlu0 %189
    %v191 = vsel %vm166, %v158, 0.0
    %192 = vadd.xlane.f32.xlu0 %v191
    %v193 = vpop.xlane.xlu0 %192
    %v194 = vsel %vm166, %v159, 0.0
    %195 = vadd.xlane.f32.xlu0 %v194
    %v196 = vpop.xlane.xlu0 %195
    %v197 = vsel %vm166, %v160, 0.0
    %198 = vadd.xlane.f32.xlu0 %v197
    %v199 = vpop.xlane.xlu0 %198
    %v200 = vsel %vm166, %v161, 0.0
    %201 = vadd.xlane.f32.xlu0 %v200
    %v202 = vpop.xlane.xlu0 %201
    %v203 = vsel %vm166, %v162, 0.0
    %204 = vadd.xlane.f32.xlu0 %v203
    %v205 = vpop.xlane.xlu0 %204
    %v206 = vsel %vm166, %v163, 0.0
    %207 = vadd.xlane.f32.xlu0 %v206
    %v208 = vpop.xlane.xlu0 %207
    %v209 = vsel %vm166, %v164, 0.0
    %210 = vadd.xlane.f32.xlu0 %v209
    %v211 = vpop.xlane.xlu0 %210
    %v212 = vsel %vm166, %v165, 0.0
    %213 = vadd.xlane.f32.xlu0 %v212
    %v214 = vpop.xlane.xlu0 %213
    %v215 = vld [vmem:[#allocation2] sm:$0x1]
    %v217 = vlaneseq
    %v218 = vshrl.u32 %v217, 7
    %v219 = vsub.s32 0, %v218
    %v220 = vrot.slane %v215, %v219
    %221 = vset.pattern.permute.xlu0 0
    %222 = vperm.xlu0 %221, %v220
    %v223 = vpop.permute.xlu0 %222
    %v225 = vadd.f32 %v169, %v223
    %v226 = vadd.f32 %v172, %v223
    %v227 = vadd.f32 %v175, %v223
    %v228 = vadd.f32 %v178, %v223
    %v229 = vadd.f32 %v181, %v223
    %v230 = vadd.f32 %v184, %v223
    %v231 = vadd.f32 %v187, %v223
    %v232 = vadd.f32 %v190, %v223
    %v233 = vadd.f32 %v193, %v223
    %v234 = vadd.f32 %v196, %v223
    %v235 = vadd.f32 %v199, %v223
    %v236 = vadd.f32 %v202, %v223
    %v237 = vadd.f32 %v205, %v223
    %v238 = vadd.f32 %v208, %v223
    %v239 = vadd.f32 %v211, %v223
    %v240 = vadd.f32 %v214, %v223
    %v257 = vlaneseq
    %v258 = vand.u32 %v257, 127
    %v259 = vlaneseq
    %v260 = vshrl.u32 %v259, 7
    %v261 = vsub.s32 %v258, %v260
    %v262 = vrot.slane %v225, %v261
    %v263 = vlaneseq
    %v264 = vshrl.u32 %v263, 7
    %v265 = vsub.s32 %v258, %v264
    %v266 = vrot.slane %v226, %v265
    %v267 = vlaneseq
    %v268 = vshrl.u32 %v267, 7
    %v269 = vsub.s32 %v258, %v268
    %v270 = vrot.slane %v227, %v269
    %v271 = vlaneseq
    %v272 = vshrl.u32 %v271, 7
    %v273 = vsub.s32 %v258, %v272
    %v274 = vrot.slane %v228, %v273
    %v275 = vlaneseq
    %v276 = vshrl.u32 %v275, 7
    %v277 = vsub.s32 %v258, %v276
    %v278 = vrot.slane %v229, %v277
    %v279 = vlaneseq
    %v280 = vshrl.u32 %v279, 7
    %v281 = vsub.s32 %v258, %v280
    %v282 = vrot.slane %v230, %v281
    %v283 = vlaneseq
    %v284 = vshrl.u32 %v283, 7
    %v285 = vsub.s32 %v258, %v284
    %v286 = vrot.slane %v231, %v285
    %v287 = vlaneseq
    %v288 = vshrl.u32 %v287, 7
    %v289 = vsub.s32 %v258, %v288
    %v290 = vrot.slane %v232, %v289
    %v291 = vlaneseq
    %v292 = vshrl.u32 %v291, 7
    %v293 = vsub.s32 %v258, %v292
    %v294 = vrot.slane %v233, %v293
    %v295 = vlaneseq
    %v296 = vshrl.u32 %v295, 7
    %v297 = vsub.s32 %v258, %v296
    %v298 = vrot.slane %v234, %v297
    %v299 = vlaneseq
    %v300 = vshrl.u32 %v299, 7
    %v301 = vsub.s32 %v258, %v300
    %v302 = vrot.slane %v235, %v301
    %v303 = vlaneseq
    %v304 = vshrl.u32 %v303, 7
    %v305 = vsub.s32 %v258, %v304
    %v306 = vrot.slane %v236, %v305
    %v307 = vlaneseq
    %v308 = vshrl.u32 %v307, 7
    %v309 = vsub.s32 %v258, %v308
    %v310 = vrot.slane %v237, %v309
    %v311 = vlaneseq
    %v312 = vshrl.u32 %v311, 7
    %v313 = vsub.s32 %v258, %v312
    %v314 = vrot.slane %v238, %v313
    %v315 = vlaneseq
    %v316 = vshrl.u32 %v315, 7
    %v317 = vsub.s32 %v258, %v316
    %v318 = vrot.slane %v239, %v317
    %v319 = vlaneseq
    %v320 = vshrl.u32 %v319, 7
    %v321 = vsub.s32 %v258, %v320
    %v322 = vrot.slane %v240, %v321
    %vm323 = vcmask 1041409
    %v324 = vsel %vm323, %v266, %v262
    %vm325 = vcmask 1042434
    %v326 = vsel %vm325, %v270, %v324
    %vm327 = vcmask 1043459
    %v328 = vsel %vm327, %v274, %v326
    %vm329 = vcmask 1044484
    %v330 = vsel %vm329, %v278, %v328
    %vm331 = vcmask 1045509
    %v332 = vsel %vm331, %v282, %v330
    %vm333 = vcmask 1046534
    %v334 = vsel %vm333, %v286, %v332
    %vm335 = vcmask 1047559
    %v336 = vsel %vm335, %v290, %v334
    %v337 = vsel %vm323, %v298, %v294
    %v338 = vsel %vm325, %v302, %v337
    %v339 = vsel %vm327, %v306, %v338
    %v340 = vsel %vm329, %v310, %v339
    %v341 = vsel %vm331, %v314, %v340
    %v342 = vsel %vm333, %v318, %v341
    %v343 = vsel %vm335, %v322, %v342
    %vm346 = vcmask 39936
    %v347 = vsel %vm346, %v336, -inf
    %348 = vmax.xlane.f32.xlu0 %v347
    %v349 = vpop.xlane.xlu0 %348
    %v350 = vsel %vm346, %v343, -inf
    %351 = vmax.xlane.f32.xlu0 %v350
    %v352 = vpop.xlane.xlu0 %351
    %v355 = vlaneseq
    %v356 = vshrl.u32 %v355, 7
    %v357 = vsub.s32 0, %v356
    %v358 = vrot.slane %v349, %v357
    %v359 = vlaneseq
    %v360 = vshrl.u32 %v359, 7
    %v361 = vsub.s32 1, %v360
    %v362 = vrot.slane %v349, %v361
    %v363 = vlaneseq
    %v364 = vshrl.u32 %v363, 7
    %v365 = vsub.s32 2, %v364
    %v366 = vrot.slane %v349, %v365
    %v367 = vlaneseq
    %v368 = vshrl.u32 %v367, 7
    %v369 = vsub.s32 3, %v368
    %v370 = vrot.slane %v349, %v369
    %v371 = vlaneseq
    %v372 = vshrl.u32 %v371, 7
    %v373 = vsub.s32 4, %v372
    %v374 = vrot.slane %v349, %v373
    %v375 = vlaneseq
    %v376 = vshrl.u32 %v375, 7
    %v377 = vsub.s32 5, %v376
    %v378 = vrot.slane %v349, %v377
    %v379 = vlaneseq
    %v380 = vshrl.u32 %v379, 7
    %v381 = vsub.s32 6, %v380
    %v382 = vrot.slane %v349, %v381
    %v383 = vlaneseq
    %v384 = vshrl.u32 %v383, 7
    %v385 = vsub.s32 7, %v384
    %v386 = vrot.slane %v349, %v385
    %v387 = vlaneseq
    %v388 = vshrl.u32 %v387, 7
    %v389 = vsub.s32 0, %v388
    %v390 = vrot.slane %v352, %v389
    %v391 = vlaneseq
    %v392 = vshrl.u32 %v391, 7
    %v393 = vsub.s32 1, %v392
    %v394 = vrot.slane %v352, %v393
    %v395 = vlaneseq
    %v396 = vshrl.u32 %v395, 7
    %v397 = vsub.s32 2, %v396
    %v398 = vrot.slane %v352, %v397
    %v399 = vlaneseq
    %v400 = vshrl.u32 %v399, 7
    %v401 = vsub.s32 3, %v400
    %v402 = vrot.slane %v352, %v401
    %v403 = vlaneseq
    %v404 = vshrl.u32 %v403, 7
    %v405 = vsub.s32 4, %v404
    %v406 = vrot.slane %v352, %v405
    %v407 = vlaneseq
    %v408 = vshrl.u32 %v407, 7
    %v409 = vsub.s32 5, %v408
    %v410 = vrot.slane %v352, %v409
    %v411 = vlaneseq
    %v412 = vshrl.u32 %v411, 7
    %v413 = vsub.s32 6, %v412
    %v414 = vrot.slane %v352, %v413
    %v415 = vlaneseq
    %v416 = vshrl.u32 %v415, 7
    %v417 = vsub.s32 7, %v416
    %v418 = vrot.slane %v352, %v417
    %v435 = vsub.f32 %v225, %v358
    %v436 = vsub.f32 %v226, %v362
    %v437 = vsub.f32 %v227, %v366
    %v438 = vsub.f32 %v228, %v370
    %v439 = vsub.f32 %v229, %v374
    %v440 = vsub.f32 %v230, %v378
    %v441 = vsub.f32 %v231, %v382
    %v442 = vsub.f32 %v232, %v386
    %v443 = vsub.f32 %v233, %v390
    %v444 = vsub.f32 %v234, %v394
    %v445 = vsub.f32 %v235, %v398
    %v446 = vsub.f32 %v236, %v402
    %v447 = vsub.f32 %v237, %v406
    %v448 = vsub.f32 %v238, %v410
    %v449 = vsub.f32 %v239, %v414
    %v450 = vsub.f32 %v240, %v418
    %v451 = vmul.f32 %v435, 1.442695
    %v452 = vpow.pop %v451
    %v453 = vmul.f32 %v436, 1.442695
    %v454 = vpow.pop %v453
    %v455 = vmul.f32 %v437, 1.442695
    %v456 = vpow.pop %v455
    %v457 = vmul.f32 %v438, 1.442695
    %v458 = vpow.pop %v457
    %v459 = vmul.f32 %v439, 1.442695
    %v460 = vpow.pop %v459
    %v461 = vmul.f32 %v440, 1.442695
    %v462 = vpow.pop %v461
    %v463 = vmul.f32 %v441, 1.442695
    %v464 = vpow.pop %v463
    %v465 = vmul.f32 %v442, 1.442695
    %v466 = vpow.pop %v465
    %v467 = vmul.f32 %v443, 1.442695
    %v468 = vpow.pop %v467
    %v469 = vmul.f32 %v444, 1.442695
    %v470 = vpow.pop %v469
    %v471 = vmul.f32 %v445, 1.442695
    %v472 = vpow.pop %v471
    %v473 = vmul.f32 %v446, 1.442695
    %v474 = vpow.pop %v473
    %v475 = vmul.f32 %v447, 1.442695
    %v476 = vpow.pop %v475
    %v477 = vmul.f32 %v448, 1.442695
    %v478 = vpow.pop %v477
    %v479 = vmul.f32 %v449, 1.442695
    %v480 = vpow.pop %v479
    %v481 = vmul.f32 %v450, 1.442695
    %v482 = vpow.pop %v481
    %499 = vset.pattern.permute.xlu0 0
    %500 = vperm.xlu0 %499, %v452
    %v501 = vpop.permute.xlu0 %500
    %502 = vset.pattern.permute.xlu0 0
    %503 = vperm.xlu0 %502, %v454
    %v504 = vpop.permute.xlu0 %503
    %505 = vset.pattern.permute.xlu0 0
    %506 = vperm.xlu0 %505, %v456
    %v507 = vpop.permute.xlu0 %506
    %508 = vset.pattern.permute.xlu0 0
    %509 = vperm.xlu0 %508, %v458
    %v510 = vpop.permute.xlu0 %509
    %511 = vset.pattern.permute.xlu0 0
    %512 = vperm.xlu0 %511, %v460
    %v513 = vpop.permute.xlu0 %512
    %514 = vset.pattern.permute.xlu0 0
    %515 = vperm.xlu0 %514, %v462
    %v516 = vpop.permute.xlu0 %515
    %517 = vset.pattern.permute.xlu0 0
    %518 = vperm.xlu0 %517, %v464
    %v519 = vpop.permute.xlu0 %518
    %520 = vset.pattern.permute.xlu0 0
    %521 = vperm.xlu0 %520, %v466
    %v522 = vpop.permute.xlu0 %521
    %523 = vset.pattern.permute.xlu0 0
    %524 = vperm.xlu0 %523, %v468
    %v525 = vpop.permute.xlu0 %524
    %526 = vset.pattern.permute.xlu0 0
    %527 = vperm.xlu0 %526, %v470
    %v528 = vpop.permute.xlu0 %527
    %529 = vset.pattern.permute.xlu0 0
    %530 = vperm.xlu0 %529, %v472
    %v531 = vpop.permute.xlu0 %530
    %532 = vset.pattern.permute.xlu0 0
    %533 = vperm.xlu0 %532, %v474
    %v534 = vpop.permute.xlu0 %533
    %535 = vset.pattern.permute.xlu0 0
    %536 = vperm.xlu0 %535, %v476
    %v537 = vpop.permute.xlu0 %536
    %538 = vset.pattern.permute.xlu0 0
    %539 = vperm.xlu0 %538, %v478
    %v540 = vpop.permute.xlu0 %539
    %541 = vset.pattern.permute.xlu0 0
    %542 = vperm.xlu0 %541, %v480
    %v543 = vpop.permute.xlu0 %542
    %544 = vset.pattern.permute.xlu0 0
    %545 = vperm.xlu0 %544, %v482
    %v546 = vpop.permute.xlu0 %545
    %v547 = vlaneseq
    %v548 = vshrl.u32 %v547, 7
    %v549 = vsub.s32 %v258, %v548
    %v550 = vrot.slane %v501, %v549
    %v551 = vlaneseq
    %v552 = vshrl.u32 %v551, 7
    %v553 = vsub.s32 %v258, %v552
    %v554 = vrot.slane %v504, %v553
    %v555 = vlaneseq
    %v556 = vshrl.u32 %v555, 7
    %v557 = vsub.s32 %v258, %v556
    %v558 = vrot.slane %v507, %v557
    %v559 = vlaneseq
    %v560 = vshrl.u32 %v559, 7
    %v561 = vsub.s32 %v258, %v560
    %v562 = vrot.slane %v510, %v561
    %v563 = vlaneseq
    %v564 = vshrl.u32 %v563, 7
    %v565 = vsub.s32 %v258, %v564
    %v566 = vrot.slane %v513, %v565
    %v567 = vlaneseq
    %v568 = vshrl.u32 %v567, 7
    %v569 = vsub.s32 %v258, %v568
    %v570 = vrot.slane %v516, %v569
    %v571 = vlaneseq
    %v572 = vshrl.u32 %v571, 7
    %v573 = vsub.s32 %v258, %v572
    %v574 = vrot.slane %v519, %v573
    %v575 = vlaneseq
    %v576 = vshrl.u32 %v575, 7
    %v577 = vsub.s32 %v258, %v576
    %v578 = vrot.slane %v522, %v577
    %v579 = vlaneseq
    %v580 = vshrl.u32 %v579, 7
    %v581 = vsub.s32 %v258, %v580
    %v582 = vrot.slane %v525, %v581
    %v583 = vlaneseq
    %v584 = vshrl.u32 %v583, 7
    %v585 = vsub.s32 %v258, %v584
    %v586 = vrot.slane %v528, %v585
    %v587 = vlaneseq
    %v588 = vshrl.u32 %v587, 7
    %v589 = vsub.s32 %v258, %v588
    %v590 = vrot.slane %v531, %v589
    %v591 = vlaneseq
    %v592 = vshrl.u32 %v591, 7
    %v593 = vsub.s32 %v258, %v592
    %v594 = vrot.slane %v534, %v593
    %v595 = vlaneseq
    %v596 = vshrl.u32 %v595, 7
    %v597 = vsub.s32 %v258, %v596
    %v598 = vrot.slane %v537, %v597
    %v599 = vlaneseq
    %v600 = vshrl.u32 %v599, 7
    %v601 = vsub.s32 %v258, %v600
    %v602 = vrot.slane %v540, %v601
    %v603 = vlaneseq
    %v604 = vshrl.u32 %v603, 7
    %v605 = vsub.s32 %v258, %v604
    %v606 = vrot.slane %v543, %v605
    %v607 = vlaneseq
    %v608 = vshrl.u32 %v607, 7
    %v609 = vsub.s32 %v258, %v608
    %v610 = vrot.slane %v546, %v609
    %v611 = vsel %vm323, %v554, %v550
    %v612 = vsel %vm325, %v558, %v611
    %v613 = vsel %vm327, %v562, %v612
    %v614 = vsel %vm329, %v566, %v613
    %v615 = vsel %vm331, %v570, %v614
    %v616 = vsel %vm333, %v574, %v615
    %v617 = vsel %vm335, %v578, %v616
    %v618 = vsel %vm323, %v586, %v582
    %v619 = vsel %vm325, %v590, %v618
    %v620 = vsel %vm327, %v594, %v619
    %v621 = vsel %vm329, %v598, %v620
    %v622 = vsel %vm331, %v602, %v621
    %v623 = vsel %vm333, %v606, %v622
    %v624 = vsel %vm335, %v610, %v623
    %v627 = vsel %vm346, %v617, 0.0
    %628 = vadd.xlane.f32.xlu0 %v627
    %v629 = vpop.xlane.xlu0 %628
    %v630 = vsel %vm346, %v624, 0.0
    %631 = vadd.xlane.f32.xlu0 %v630
    %v632 = vpop.xlane.xlu0 %631
    %v635 = vlaneseq
    %v636 = vshrl.u32 %v635, 7
    %v637 = vsub.s32 0, %v636
    %v638 = vrot.slane %v629, %v637
    %v639 = vlaneseq
    %v640 = vshrl.u32 %v639, 7
    %v641 = vsub.s32 1, %v640
    %v642 = vrot.slane %v629, %v641
    %v643 = vlaneseq
    %v644 = vshrl.u32 %v643, 7
    %v645 = vsub.s32 2, %v644
    %v646 = vrot.slane %v629, %v645
    %v647 = vlaneseq
    %v648 = vshrl.u32 %v647, 7
    %v649 = vsub.s32 3, %v648
    %v650 = vrot.slane %v629, %v649
    %v651 = vlaneseq
    %v652 = vshrl.u32 %v651, 7
    %v653 = vsub.s32 4, %v652
    %v654 = vrot.slane %v629, %v653
    %v655 = vlaneseq
    %v656 = vshrl.u32 %v655, 7
    %v657 = vsub.s32 5, %v656
    %v658 = vrot.slane %v629, %v657
    %v659 = vlaneseq
    %v660 = vshrl.u32 %v659, 7
    %v661 = vsub.s32 6, %v660
    %v662 = vrot.slane %v629, %v661
    %v663 = vlaneseq
    %v664 = vshrl.u32 %v663, 7
    %v665 = vsub.s32 7, %v664
    %v666 = vrot.slane %v629, %v665
    %v667 = vlaneseq
    %v668 = vshrl.u32 %v667, 7
    %v669 = vsub.s32 0, %v668
    %v670 = vrot.slane %v632, %v669
    %v671 = vlaneseq
    %v672 = vshrl.u32 %v671, 7
    %v673 = vsub.s32 1, %v672
    %v674 = vrot.slane %v632, %v673
    %v675 = vlaneseq
    %v676 = vshrl.u32 %v675, 7
    %v677 = vsub.s32 2, %v676
    %v678 = vrot.slane %v632, %v677
    %v679 = vlaneseq
    %v680 = vshrl.u32 %v679, 7
    %v681 = vsub.s32 3, %v680
    %v682 = vrot.slane %v632, %v681
    %v683 = vlaneseq
    %v684 = vshrl.u32 %v683, 7
    %v685 = vsub.s32 4, %v684
    %v686 = vrot.slane %v632, %v685
    %v687 = vlaneseq
    %v688 = vshrl.u32 %v687, 7
    %v689 = vsub.s32 5, %v688
    %v690 = vrot.slane %v632, %v689
    %v691 = vlaneseq
    %v692 = vshrl.u32 %v691, 7
    %v693 = vsub.s32 6, %v692
    %v694 = vrot.slane %v632, %v693
    %v695 = vlaneseq
    %v696 = vshrl.u32 %v695, 7
    %v697 = vsub.s32 7, %v696
    %v698 = vrot.slane %v632, %v697
    %v715 = vrcp.pop %v638
    %v716 = vmul.f32 %v452, %v715
    %v717 = vrcp.pop %v642
    %v718 = vmul.f32 %v454, %v717
    %v719 = vrcp.pop %v646
    %v720 = vmul.f32 %v456, %v719
    %v721 = vrcp.pop %v650
    %v722 = vmul.f32 %v458, %v721
    %v723 = vrcp.pop %v654
    %v724 = vmul.f32 %v460, %v723
    %v725 = vrcp.pop %v658
    %v726 = vmul.f32 %v462, %v725
    %v727 = vrcp.pop %v662
    %v728 = vmul.f32 %v464, %v727
    %v729 = vrcp.pop %v666
    %v730 = vmul.f32 %v466, %v729
    %v731 = vrcp.pop %v670
    %v732 = vmul.f32 %v468, %v731
    %v733 = vrcp.pop %v674
    %v734 = vmul.f32 %v470, %v733
    %v735 = vrcp.pop %v678
    %v736 = vmul.f32 %v472, %v735
    %v737 = vrcp.pop %v682
    %v738 = vmul.f32 %v474, %v737
    %v739 = vrcp.pop %v686
    %v740 = vmul.f32 %v476, %v739
    %v741 = vrcp.pop %v690
    %v742 = vmul.f32 %v478, %v741
    %v743 = vrcp.pop %v694
    %v744 = vmul.f32 %v480, %v743
    %v745 = vrcp.pop %v698
    %v746 = vmul.f32 %v482, %v745
    %763 = vset.pattern.permute.xlu0 0
    %764 = vperm.xlu0 %763, %v716
    %v765 = vpop.permute.xlu0 %764
    %766 = vset.pattern.permute.xlu0 0
    %767 = vperm.xlu0 %766, %v718
    %v768 = vpop.permute.xlu0 %767
    %769 = vset.pattern.permute.xlu0 0
    %770 = vperm.xlu0 %769, %v720
    %v771 = vpop.permute.xlu0 %770
    %772 = vset.pattern.permute.xlu0 0
    %773 = vperm.xlu0 %772, %v722
    %v774 = vpop.permute.xlu0 %773
    %775 = vset.pattern.permute.xlu0 0
    %776 = vperm.xlu0 %775, %v724
    %v777 = vpop.permute.xlu0 %776
    %778 = vset.pattern.permute.xlu0 0
    %779 = vperm.xlu0 %778, %v726
    %v780 = vpop.permute.xlu0 %779
    %781 = vset.pattern.permute.xlu0 0
    %782 = vperm.xlu0 %781, %v728
    %v783 = vpop.permute.xlu0 %782
    %784 = vset.pattern.permute.xlu0 0
    %785 = vperm.xlu0 %784, %v730
    %v786 = vpop.permute.xlu0 %785
    %787 = vset.pattern.permute.xlu0 0
    %788 = vperm.xlu0 %787, %v732
    %v789 = vpop.permute.xlu0 %788
    %790 = vset.pattern.permute.xlu0 0
    %791 = vperm.xlu0 %790, %v734
    %v792 = vpop.permute.xlu0 %791
    %793 = vset.pattern.permute.xlu0 0
    %794 = vperm.xlu0 %793, %v736
    %v795 = vpop.permute.xlu0 %794
    %796 = vset.pattern.permute.xlu0 0
    %797 = vperm.xlu0 %796, %v738
    %v798 = vpop.permute.xlu0 %797
    %799 = vset.pattern.permute.xlu0 0
    %800 = vperm.xlu0 %799, %v740
    %v801 = vpop.permute.xlu0 %800
    %802 = vset.pattern.permute.xlu0 0
    %803 = vperm.xlu0 %802, %v742
    %v804 = vpop.permute.xlu0 %803
    %805 = vset.pattern.permute.xlu0 0
    %806 = vperm.xlu0 %805, %v744
    %v807 = vpop.permute.xlu0 %806
    %808 = vset.pattern.permute.xlu0 0
    %809 = vperm.xlu0 %808, %v746
    %v810 = vpop.permute.xlu0 %809
    %v811 = vlaneseq
    %v812 = vshrl.u32 %v811, 7
    %v813 = vsub.s32 %v258, %v812
    %v814 = vrot.slane %v765, %v813
    %v815 = vlaneseq
    %v816 = vshrl.u32 %v815, 7
    %v817 = vsub.s32 %v258, %v816
    %v818 = vrot.slane %v768, %v817
    %v819 = vlaneseq
    %v820 = vshrl.u32 %v819, 7
    %v821 = vsub.s32 %v258, %v820
    %v822 = vrot.slane %v771, %v821
    %v823 = vlaneseq
    %v824 = vshrl.u32 %v823, 7
    %v825 = vsub.s32 %v258, %v824
    %v826 = vrot.slane %v774, %v825
    %v827 = vlaneseq
    %v828 = vshrl.u32 %v827, 7
    %v829 = vsub.s32 %v258, %v828
    %v830 = vrot.slane %v777, %v829
    %v831 = vlaneseq
    %v832 = vshrl.u32 %v831, 7
    %v833 = vsub.s32 %v258, %v832
    %v834 = vrot.slane %v780, %v833
    %v835 = vlaneseq
    %v836 = vshrl.u32 %v835, 7
    %v837 = vsub.s32 %v258, %v836
    %v838 = vrot.slane %v783, %v837
    %v839 = vlaneseq
    %v840 = vshrl.u32 %v839, 7
    %v841 = vsub.s32 %v258, %v840
    %v842 = vrot.slane %v786, %v841
    %v843 = vlaneseq
    %v844 = vshrl.u32 %v843, 7
    %v845 = vsub.s32 %v258, %v844
    %v846 = vrot.slane %v789, %v845
    %v847 = vlaneseq
    %v848 = vshrl.u32 %v847, 7
    %v849 = vsub.s32 %v258, %v848
    %v850 = vrot.slane %v792, %v849
    %v851 = vlaneseq
    %v852 = vshrl.u32 %v851, 7
    %v853 = vsub.s32 %v258, %v852
    %v854 = vrot.slane %v795, %v853
    %v855 = vlaneseq
    %v856 = vshrl.u32 %v855, 7
    %v857 = vsub.s32 %v258, %v856
    %v858 = vrot.slane %v798, %v857
    %v859 = vlaneseq
    %v860 = vshrl.u32 %v859, 7
    %v861 = vsub.s32 %v258, %v860
    %v862 = vrot.slane %v801, %v861
    %v863 = vlaneseq
    %v864 = vshrl.u32 %v863, 7
    %v865 = vsub.s32 %v258, %v864
    %v866 = vrot.slane %v804, %v865
    %v867 = vlaneseq
    %v868 = vshrl.u32 %v867, 7
    %v869 = vsub.s32 %v258, %v868
    %v870 = vrot.slane %v807, %v869
    %v871 = vlaneseq
    %v872 = vshrl.u32 %v871, 7
    %v873 = vsub.s32 %v258, %v872
    %v874 = vrot.slane %v810, %v873
    %v875 = vsel %vm323, %v818, %v814
    %v876 = vsel %vm325, %v822, %v875
    %v877 = vsel %vm327, %v826, %v876
    %v878 = vsel %vm329, %v830, %v877
    %v879 = vsel %vm331, %v834, %v878
    %v880 = vsel %vm333, %v838, %v879
    %v881 = vsel %vm335, %v842, %v880
    %v882 = vsel %vm323, %v850, %v846
    %v883 = vsel %vm325, %v854, %v882
    %v884 = vsel %vm327, %v858, %v883
    %v885 = vsel %vm329, %v862, %v884
    %v886 = vsel %vm331, %v866, %v885
    %v887 = vsel %vm333, %v870, %v886
    %v888 = vsel %vm335, %v874, %v887
    %891 = vst.msk [vmem:[%s9] sm:$0xff] %vm346, %v881
    %892 = vst.msk [vmem:[%s9 + $0x8] sm:$0xff] %vm346, %v888
    // Predicated region
    $region30: #{tpu_custom_call.1} parent=1 // pred_check
      _
    $region31: #{tpu_custom_call.1} parent=1 // pred_check_branch
      %894 = sbr.rel (0) target = $region33
    $region32: #{tpu_custom_call.1} parent=1 // pred_region
      %s896 = ssub.s32 16, 16
      %897 = vsyncadd [#allocation4], %s896
      %s899 = sshll.u32 [#allocation3], 4
      %s900 = int_to_ptr.vmem [resolvable:$true] %s899
      %902 = dma.vmem_to_hbm [thread:$0]  %s900, 16, %s7, [#allocation4]
    $region33: #{tpu_custom_call.1} parent=1 // pred_fallthru
      _
    // Predicated region
    $region34: #{tpu_custom_call.1} parent=1 // pred_check
      _
    $region35: #{tpu_custom_call.1} parent=1 // pred_check_branch
      %904 = sbr.rel (0) target = $region37
    $region36: #{tpu_custom_call.1} parent=1 // pred_region
      %s906 = ssub.s32 16, 16
      %907 = vsyncadd [#allocation6], %s906
      %s909 = sshll.u32 [#allocation5], 4
      %s910 = int_to_ptr.vmem [resolvable:$true] %s909
      %912 = dma.vmem_to_hbm [thread:$0]  %s910, 16, %s8, [#allocation6]
    $region37: #{tpu_custom_call.1} parent=1 // pred_fallthru
      _
    // Predicated region
    $region38: #{tpu_custom_call.1} parent=1 // pred_check
      _
    $region39: #{tpu_custom_call.1} parent=1 // pred_check_branch
      %914 = sbr.rel (0) target = $region41
    $region40: #{tpu_custom_call.1} parent=1 // pred_region
      _
    $region41: #{tpu_custom_call.1} parent=1 // pred_fallthru
      _
    // Predicated region
    $region42: #{tpu_custom_call.1} parent=1 // pred_check
      _
    $region43: #{tpu_custom_call.1} parent=1 // pred_check_branch
      %916 = sbr.rel (0) target = $region45
    $region44: #{tpu_custom_call.1} parent=1 // pred_region
      %917 = dma.done [#allocation4], 16
    $region45: #{tpu_custom_call.1} parent=1 // pred_fallthru
      _
    // Predicated region
    $region46: #{tpu_custom_call.1} parent=1 // pred_check
      _
    $region47: #{tpu_custom_call.1} parent=1 // pred_check_branch
      %919 = sbr.rel (0) target = $region49
    $region48: #{tpu_custom_call.1} parent=1 // pred_region
      %920 = dma.done [#allocation6], 16
    $region49: #{tpu_custom_call.1} parent=1 // pred_fallthru
      _
    // Predicated region
    $region50: #{tpu_custom_call.1} parent=1 // pred_check
      _
    $region51: #{tpu_custom_call.1} parent=1 // pred_check_branch
      %922 = sbr.rel (0) target = $region53
    $region52: #{tpu_custom_call.1} parent=1 // pred_region
      _
    $region53: #{tpu_custom_call.1} parent=1 // pred_fallthru
      _
    %923 = vsyncpa [#allocation4], 1
    %924 = vsyncpa [#allocation6], 1

</llo_original>
